<compile_context>
chip_gen: v7x
topology: tpu7x:2x2x1
jax: 0.10.0
libtpu: 0.0.40
codegen_flags: <defaults>
</compile_context>

<pallas_src>
import functools

import jax
import jax.numpy as jnp
from jax.experimental import pallas as pl
from jax.experimental.pallas import tpu as pltpu


ALPHA = 0.1                 # initial-residual mixing coefficient
LANE = 128                  # pad feature / node axes to lane-dense multiples of 128
VMEM_LIMIT_BYTES = 48 * 1024 * 1024   # safe on v7x (64 MiB physical) and v5e/v6e


def _gcn_fused_kernel(adj_ref, x_ref, wcat_ref, b1_ref, b2_ref, out_ref, *, alpha):
    """Fused 2-layer GCN forward for one graph (one grid step).

    adj_ref  : (Np, Np)    compute dtype, already scaled by (1 - alpha)
    x_ref    : (Np, Fp)    node features == h0, zero-padded
    wcat_ref : (Fp, 2*Fp)  [:, :Fp] = W1, [:, Fp:] = W2 (zero-padded)
    b*_ref   : (1, Fp)     zero-padded biases, f32
    out_ref  : (Np, Fp)    f32; valid output is [:N, :f_out]
    """
    adj = adj_ref[...]
    x = x_ref[...]
    wcat = wcat_ref[...]
    fp = wcat.shape[1] // 2
    cdt = adj.dtype  # MXU operand dtype

    # ---- one MXU pass projects x through both W1 and W2 (256-wide RHS) ----
    xw = jnp.dot(x, wcat, preferred_element_type=jnp.float32)   # (Np, 2*Fp)
    xw1 = xw[:, :fp]          # x @ W1
    h0w2 = xw[:, fp:]         # h0 @ W2   (h0 == x)

    # ---- layer 1:  relu(((1-a)*adj) @ (x@W1) + a*(x@W1) + b1) ----
    agg1 = jnp.dot(adj, xw1.astype(cdt), preferred_element_type=jnp.float32)  # MXU
    x1 = jnp.maximum(agg1 + alpha * xw1 + b1_ref[...], 0.0)                   # VPU, f32

    # F.dropout is identity in eval mode.
    # TODO(synk): training-mode dropout would use pltpu.prng_seed /
    # pltpu.prng_random_bits on x1 right here.

    # ---- layer 2:  ((1-a)*adj) @ (x1@W2) + a*(h0@W2) + b2 ----
    w2 = wcat[:, fp:]
    zw2 = jnp.dot(x1.astype(cdt), w2, preferred_element_type=jnp.float32)     # MXU
    agg2 = jnp.dot(adj, zw2.astype(cdt), preferred_element_type=jnp.float32)  # MXU
    out = agg2 + alpha * h0w2 + b2_ref[...]                                   # VPU, f32
    out_ref[...] = out.astype(out_ref.dtype)


def gcn_forward(x, adj, params, *, dropout=0.5, training=False,
                alpha=ALPHA, compute_dtype=jnp.bfloat16):
    """GCN.forward (eval mode):
        h0 = x ; x = relu(gc1(x, adj, h0)) ; x = dropout(x) ; x = gc2(x, adj, h0)
    fused into a single pallas_call.  Accepts a single graph (x:(N,F),
    adj:(N,N)) or a batch of graphs (x:(B,N,F), adj:(B,N,N)); each graph is
    one grid step, the batch axis is "parallel" and the weights stay
    VMEM-resident across the grid.
    """
    single = (x.ndim == 2)
    if single:
        x, adj = x[None], adj[None]
    b_, n, f_in = x.shape
    f_hid = params["w1"].shape[1]
    f_out = params["w2"].shape[1]
    assert adj.shape == (b_, n, n)
    assert params["w1"].shape[0] == f_in and params["w2"].shape[0] == f_hid
    assert f_in == f_hid, "initial-residual GraphConvolution needs matching dims"

    if training and dropout > 0.0:
        # TODO(synk): training-mode dropout not wired in; forward is eval-mode.
        pass

    # Lane-dense padding (zero rows/cols are exact no-ops and are sliced off).
    fp = max(LANE, pl.cdiv(max(f_in, f_hid, f_out), LANE) * LANE)
    np_ = max(LANE, pl.cdiv(n, LANE) * LANE)

    # Fold (1-alpha) into adj once (rides the existing cast), pad, cast.
    # NOTE: for accuracy-sensitive inference keep compute_dtype=f32 so the
    # row-normalized adjacency is not truncated to bf16.
    adj_c = jnp.pad((1.0 - alpha) * adj,
                    ((0, 0), (0, np_ - n), (0, np_ - n))).astype(compute_dtype)
    x_p = jnp.pad(x, ((0, 0), (0, np_ - n), (0, fp - f_in))).astype(compute_dtype)
    w1_p = jnp.pad(params["w1"], ((0, fp - f_in), (0, fp - f_hid)))
    w2_p = jnp.pad(params["w2"], ((0, fp - f_hid), (0, fp - f_out)))
    wcat = jnp.concatenate([w1_p, w2_p], axis=1).astype(compute_dtype)  # (fp, 2*fp)
    b1_p = jnp.pad(params["b1"], ((0, 0), (0, fp - f_hid))).astype(jnp.float32)
    b2_p = jnp.pad(params["b2"], ((0, 0), (0, fp - f_out))).astype(jnp.float32)

    # ---- VMEM accounting (per grid step, double-buffered inputs/outputs) ----
    itemsize = jnp.dtype(compute_dtype).itemsize
    per_step_in = (np_ * np_ + np_ * fp + fp * 2 * fp) * itemsize + 2 * fp * 4
    per_step_out = np_ * fp * 4
    # x2: Pallas double-buffers every BlockSpec input and output.
    # +7*np_*fp*4: f32 intermediates (xw counts twice: it is 2*fp lanes wide;
    # plus agg1, x1, zw2, agg2, out temporary).
    approx_vmem = 2 * (per_step_in + per_step_out) + 7 * np_ * fp * 4
    assert approx_vmem < int(0.75 * VMEM_LIMIT_BYTES), (
        "graph too large for the fully fused kernel")
    # TODO(synk): for larger graphs switch to a row-tiled two-phase variant
    # (layer-1 rows into an (Np, Fp) VMEM scratch, then layer 2); derive the
    # adj row tile against ~48 MiB on v7x (64 MiB VMEM) vs ~100+ MiB usable on
    # v5e/v6e, and emit bf16 output to halve HBM writeback.

    # Advisory cost estimate so XLA schedules/overlaps the call correctly.
    flops = b_ * (6 * np_ * fp * fp + 4 * np_ * np_ * fp)
    bytes_accessed = (adj_c.size + x_p.size + wcat.size) * itemsize \
        + (b1_p.size + b2_p.size) * 4 + b_ * np_ * fp * 4
    cost = pl.CostEstimate(flops=flops, transcendentals=0,
                           bytes_accessed=bytes_accessed)

    kernel = functools.partial(_gcn_fused_kernel, alpha=alpha)

    out_p = pl.pallas_call(
        kernel,
        out_shape=jax.ShapeDtypeStruct((b_, np_, fp), jnp.float32),
        grid_spec=pltpu.PrefetchScalarGridSpec(
            num_scalar_prefetch=0,
            grid=(b_,),                                        # one step per graph
            in_specs=[
                pl.BlockSpec((None, np_, np_), lambda b: (b, 0, 0)),   # adj (per graph)
                pl.BlockSpec((None, np_, fp), lambda b: (b, 0, 0)),    # x == h0
                pl.BlockSpec((fp, 2 * fp), lambda b: (0, 0)),          # W1|W2, resident
                pl.BlockSpec((1, fp), lambda b: (0, 0)),               # b1, resident
                pl.BlockSpec((1, fp), lambda b: (0, 0)),               # b2, resident
            ],
            out_specs=pl.BlockSpec((None, np_, fp), lambda b: (b, 0, 0)),
        ),
        compiler_params=pltpu.CompilerParams(
            dimension_semantics=("parallel",),   # graphs are independent (v7x 2 TCs)
            vmem_limit_bytes=VMEM_LIMIT_BYTES),
        cost_estimate=cost,
    )(adj_c, x_p, wcat, b1_p, b2_p)

    out = out_p[:, :n, :f_out]
    return out[0] if single else out


def init_params(key, nhid, nout):
    """Kipf-style uniform(-stdv, stdv) init, stdv = 1/sqrt(out_features)."""
    k1, k2, k3, k4 = jax.random.split(key, 4)
    s1 = 1.0 / jnp.sqrt(jnp.float32(nhid))
    s2 = 1.0 / jnp.sqrt(jnp.float32(nout))
    return {
        "w1": jax.random.uniform(k1, (nhid, nhid), jnp.float32, -s1, s1),
        "b1": jax.random.uniform(k2, (1, nhid), jnp.float32, -s1, s1),
        "w2": jax.random.uniform(k3, (nhid, nout), jnp.float32, -s2, s2),
        "b2": jax.random.uniform(k4, (1, nout), jnp.float32, -s2, s2),
    }


def make_normalized_adj(key, n):
    """Deterministic symmetric adjacency with self-loops, row-normalized."""
    a = (jax.random.uniform(key, (n, n)) < 0.1).astype(jnp.float32)
    a = jnp.maximum(a, a.T)
    a = a + jnp.eye(n, dtype=jnp.float32)
    deg = jnp.sum(a, axis=1, keepdims=True)
    return a / deg


def gcn_ref(x, adj, params, alpha=ALPHA):
    """Pure-JAX f32 reference with the original (non-reassociated) math."""
    def layer(xi, w, b, relu):
        s = (1.0 - alpha) * (adj @ xi) + alpha * x      # x == h0
        y = s @ w + b
        return jnp.maximum(y, 0.0) if relu else y
    return layer(layer(x, params["w1"], params["b1"], True),
                 params["w2"], params["b2"], False)


if __name__ == "__main__":
    N, NHID, NOUT = 64, 32, 16   # small graph: 64 nodes, hidden 32, out 16
    DROPOUT = 0.5

    key = jax.random.PRNGKey(0)
    kx, kadj, kp, kb = jax.random.split(key, 4)

    x = jax.random.normal(kx, (N, NHID), jnp.float32)   # node features (N, nhid)
    adj = make_normalized_adj(kadj, N)                  # (N, N)
    params = init_params(kp, NHID, NOUT)

    ref = gcn_ref(x, adj, params)

    # f32 compute path: validates the fused/reassociated kernel tightly.
    out_f32 = jax.block_until_ready(
        gcn_forward(x, adj, params, dropout=DROPOUT, training=False,
                    compute_dtype=jnp.float32))
    assert out_f32.shape == (N, NOUT)
    assert jnp.allclose(out_f32, ref, atol=1e-4, rtol=1e-4)

    # bf16-MXU path (f32 accumulation): the fast path, looser tolerance.
    out_bf16 = jax.block_until_ready(
        gcn_forward(x, adj, params, dropout=DROPOUT, training=False,
                    compute_dtype=jnp.bfloat16))
    assert out_bf16.shape == (N, NOUT)
    assert jnp.allclose(out_bf16, ref, atol=5e-2, rtol=5e-2)

    # Batched path: B graphs in one pallas_call; weights DMA'd once and kept
    # VMEM-resident; the "parallel" batch axis feeds v7x's second TensorCore.
    B = 3
    ks = jax.random.split(kb, 2 * B)
    xs = jnp.stack([jax.random.normal(ks[i], (N, NHID), jnp.float32)
                    for i in range(B)])
    adjs = jnp.stack([make_normalized_adj(ks[B + i], N) for i in range(B)])
    out_b = jax.block_until_ready(
        gcn_forward(xs, adjs, params, dropout=DROPOUT, training=False,
                    compute_dtype=jnp.float32))
    assert out_b.shape == (B, N, NOUT)
    for i in range(B):
        assert jnp.allclose(out_b[i], gcn_ref(xs[i], adjs[i], params),
                            atol=1e-4, rtol=1e-4)

    print("KERNEL_OK")
</pallas_src>

<mosaic_0001>
module attributes {stable_mosaic.version = 11 : i64} {
  func.func @_gcn_fused_kernel(%arg0: i32, %arg1: memref<1x128x128xf32, #tpu.memory_space<vmem>>, %arg2: memref<1x128x128xf32, #tpu.memory_space<vmem>>, %arg3: memref<128x256xf32, #tpu.memory_space<vmem>>, %arg4: memref<1x128xf32, #tpu.memory_space<vmem>>, %arg5: memref<1x128xf32, #tpu.memory_space<vmem>>, %arg6: memref<1x128x128xf32, #tpu.memory_space<vmem>>) attributes {dimension_semantics = [#tpu.dimension_semantics<parallel>], iteration_bounds = array<i64: 1>, scalar_prefetch = 0 : i64, scratch_operands = 0 : i64, tpu.core_type = #tpu.core_type<tc>, window_params = [{transform_indices = @transform_0, window_bounds = array<i64: 1, 128, 128>}, {transform_indices = @transform_1, window_bounds = array<i64: 1, 128, 128>}, {pipeline_mode = #tpu.pipeline_mode<synchronous>, transform_indices = @transform_2, window_bounds = array<i64: 128, 256>}, {pipeline_mode = #tpu.pipeline_mode<synchronous>, transform_indices = @transform_3, window_bounds = array<i64: 1, 128>}, {pipeline_mode = #tpu.pipeline_mode<synchronous>, transform_indices = @transform_4, window_bounds = array<i64: 1, 128>}, {transform_indices = @transform_5, window_bounds = array<i64: 1, 128, 128>}]} {
    %c0 = arith.constant 0 : index
    %c0_0 = arith.constant 0 : index
    %c0_1 = arith.constant 0 : index
    %0 = vector.load %arg1[%c0, %c0_0, %c0_1] : memref<1x128x128xf32, #tpu.memory_space<vmem>>, vector<1x128x128xf32>
    %1 = vector.shape_cast %0 : vector<1x128x128xf32> to vector<128x128xf32>
    %c0_2 = arith.constant 0 : index
    %c0_3 = arith.constant 0 : index
    %c0_4 = arith.constant 0 : index
    %2 = vector.load %arg2[%c0_2, %c0_3, %c0_4] : memref<1x128x128xf32, #tpu.memory_space<vmem>>, vector<1x128x128xf32>
    %3 = vector.shape_cast %2 : vector<1x128x128xf32> to vector<128x128xf32>
    %c0_5 = arith.constant 0 : index
    %c0_6 = arith.constant 0 : index
    %4 = vector.load %arg3[%c0_5, %c0_6] : memref<128x256xf32, #tpu.memory_space<vmem>>, vector<128x256xf32>
    %cst = arith.constant dense<0.000000e+00> : vector<128x256xf32>
    %5 = tpu.matmul %3, %4, %cst {dimension_numbers = #tpu.dot_dimension_numbers<[1], [0], [0], [1], [0, 0, 1, 1], [], []>} : vector<128x128xf32>, vector<128x256xf32>, vector<128x256xf32> -> vector<128x256xf32>
    %6 = vector.extract_strided_slice %5 {offsets = [0, 0], sizes = [128, 128], strides = [1, 1]} : vector<128x256xf32> to vector<128x128xf32>
    %7 = vector.extract_strided_slice %5 {offsets = [0, 128], sizes = [128, 128], strides = [1, 1]} : vector<128x256xf32> to vector<128x128xf32>
    %cst_7 = arith.constant dense<0.000000e+00> : vector<128x128xf32>
    %8 = tpu.matmul %1, %6, %cst_7 {dimension_numbers = #tpu.dot_dimension_numbers<[1], [0], [0], [1], [0, 0, 1, 1], [], []>} : vector<128x128xf32>, vector<128x128xf32>, vector<128x128xf32> -> vector<128x128xf32>
    %cst_8 = arith.constant 1.000000e-01 : f32
    %9 = vector.broadcast %cst_8 : f32 to vector<128x128xf32>
    %10 = arith.mulf %9, %6 : vector<128x128xf32>
    %11 = arith.addf %8, %10 : vector<128x128xf32>
    %c0_9 = arith.constant 0 : index
    %c0_10 = arith.constant 0 : index
    %12 = vector.load %arg4[%c0_9, %c0_10] : memref<1x128xf32, #tpu.memory_space<vmem>>, vector<1x128xf32>
    %13 = vector.broadcast %12 : vector<1x128xf32> to vector<128x128xf32>
    %14 = arith.addf %11, %13 : vector<128x128xf32>
    %cst_11 = arith.constant 0.000000e+00 : f32
    %15 = vector.broadcast %cst_11 : f32 to vector<128x128xf32>
    %16 = arith.maximumf %14, %15 : vector<128x128xf32>
    %17 = vector.extract_strided_slice %4 {offsets = [0, 128], sizes = [128, 128], strides = [1, 1]} : vector<128x256xf32> to vector<128x128xf32>
    %cst_12 = arith.constant dense<0.000000e+00> : vector<128x128xf32>
    %18 = tpu.matmul %16, %17, %cst_12 {dimension_numbers = #tpu.dot_dimension_numbers<[1], [0], [0], [1], [0, 0, 1, 1], [], []>} : vector<128x128xf32>, vector<128x128xf32>, vector<128x128xf32> -> vector<128x128xf32>
    %cst_13 = arith.constant dense<0.000000e+00> : vector<128x128xf32>
    %19 = tpu.matmul %1, %18, %cst_13 {dimension_numbers = #tpu.dot_dimension_numbers<[1], [0], [0], [1], [0, 0, 1, 1], [], []>} : vector<128x128xf32>, vector<128x128xf32>, vector<128x128xf32> -> vector<128x128xf32>
    %cst_14 = arith.constant 1.000000e-01 : f32
    %20 = vector.broadcast %cst_14 : f32 to vector<128x128xf32>
    %21 = arith.mulf %20, %7 : vector<128x128xf32>
    %22 = arith.addf %19, %21 : vector<128x128xf32>
    %c0_15 = arith.constant 0 : index
    %c0_16 = arith.constant 0 : index
    %23 = vector.load %arg5[%c0_15, %c0_16] : memref<1x128xf32, #tpu.memory_space<vmem>>, vector<1x128xf32>
    %24 = vector.broadcast %23 : vector<1x128xf32> to vector<128x128xf32>
    %25 = arith.addf %22, %24 : vector<128x128xf32>
    %c0_17 = arith.constant 0 : index
    %c0_18 = arith.constant 0 : index
    %c0_19 = arith.constant 0 : index
    %26 = vector.load %arg6[%c0_17, %c0_18, %c0_19] : memref<1x128x128xf32, #tpu.memory_space<vmem>>, vector<1x128x128xf32>
    %27 = vector.shape_cast %26 : vector<1x128x128xf32> to vector<128x128xf32>
    %28 = vector.shape_cast %25 : vector<128x128xf32> to vector<1x128x128xf32>
    tpu.vector_store %arg6[%c0_17, %c0_18, %c0_19], %28 {strides = array<i32>} : memref<1x128x128xf32, #tpu.memory_space<vmem>>, vector<1x128x128xf32>,
    return
  }
  func.func @transform_0(%arg0: i32) -> (i32, i32, i32) {
    %c0_i32 = arith.constant 0 : i32
    %c0_i32_0 = arith.constant 0 : i32
    %c0_i32_1 = arith.constant 0 : i32
    return %arg0, %c0_i32, %c0_i32_0 : i32, i32, i32
  }
  func.func @transform_1(%arg0: i32) -> (i32, i32, i32) {
    %c0_i32 = arith.constant 0 : i32
    %c0_i32_0 = arith.constant 0 : i32
    %c0_i32_1 = arith.constant 0 : i32
    return %arg0, %c0_i32, %c0_i32_0 : i32, i32, i32
  }
  func.func @transform_2(%arg0: i32) -> (i32, i32) {
    %c0_i32 = arith.constant 0 : i32
    %c0_i32_0 = arith.constant 0 : i32
    %c0_i32_1 = arith.constant 0 : i32
    return %c0_i32, %c0_i32_0 : i32, i32
  }
  func.func @transform_3(%arg0: i32) -> (i32, i32) {
    %c0_i32 = arith.constant 0 : i32
    %c0_i32_0 = arith.constant 0 : i32
    %c0_i32_1 = arith.constant 0 : i32
    return %c0_i32, %c0_i32_0 : i32, i32
  }
  func.func @transform_4(%arg0: i32) -> (i32, i32) {
    %c0_i32 = arith.constant 0 : i32
    %c0_i32_0 = arith.constant 0 : i32
    %c0_i32_1 = arith.constant 0 : i32
    return %c0_i32, %c0_i32_0 : i32, i32
  }
  func.func @transform_5(%arg0: i32) -> (i32, i32, i32) {
    %c0_i32 = arith.constant 0 : i32
    %c0_i32_0 = arith.constant 0 : i32
    %c0_i32_1 = arith.constant 0 : i32
    return %arg0, %c0_i32, %c0_i32_0 : i32, i32, i32
  }
}

</mosaic_0001>

<llo_original>
// kernel: tpu_custom_call.1
$region0: #{tpu_custom_call.1}
  #allocation0 [shape = 'u32[]', space=smem, size = 0x4, offset = 0x4, fixed_abs, tag = 'smem constant byte address 0x4 - core index']
  #allocation1 [shape = 'u32[144,128]{1,0:T(1,128)}', space=vmem, size = 0x12000, scoped, tag = 'internal scratch']
  %s0 = inlined_call_operand.hbm [shape: f32[1,128,128], index: 0, kind: input, shape index: {}]
  %s1 = inlined_call_operand.hbm [shape: f32[1,128,128], index: 1, kind: input, shape index: {}]
  %s2 = inlined_call_operand.hbm [shape: f32[128,256], index: 2, kind: input, shape index: {}]
  %s3 = inlined_call_operand.vmem [shape: f32[1,128], index: 3, kind: input, shape index: {}]
  %s4 = inlined_call_operand.vmem [shape: f32[1,128], index: 4, kind: input, shape index: {}]
  %s5 = inlined_call_operand.hbm [shape: f32[1,128,128], index: 5, kind: output, shape index: {}]
  %s6 = sld [smem:[#allocation0]]
  $region42: #{tpu_custom_call.1} parent=0
    _
  %s8 = ssub.s32 1, %s6
  %s9 = scalar_select 0, %s8, %s6
  $region1: #{tpu_custom_call.1} parent=0
    #allocation2 [shape = 'u8[65536]{0}', space=vmem, size = 0x10000, scoped, tag = 'input window, operand 0, single buffered']
    #allocation3 [shape = 's32[1]{0}', space=sflag, size = 0x4, scoped, tag = 'scoped memory for tpu_custom_call.1']
    #allocation4 [shape = 's32[1]{0}', space=sflag, size = 0x4, scoped, tag = 'scoped memory for tpu_custom_call.1']
    #allocation5 [shape = 'u8[65536]{0}', space=vmem, size = 0x10000, scoped, tag = 'input window, operand 1, single buffered']
    #allocation6 [shape = 's32[1]{0}', space=sflag, size = 0x4, scoped, tag = 'scoped memory for tpu_custom_call.1']
    #allocation7 [shape = 'u8[131072]{0}', space=vmem, size = 0x20000, scoped, tag = 'input window, operand 2, single buffered']
    #allocation8 [shape = 'u8[65536]{0}', space=vmem, size = 0x10000, scoped, tag = 'output window, operand 0, single buffered']
    %10 = vsyncpa [#allocation3], 0
    %11 = vsyncpa [#allocation6], 0
    %12 = vsyncpa [#allocation4], 0
    // Predicated region
    $region2: #{tpu_custom_call.1} parent=1 // pred_check
      _
    $region3: #{tpu_custom_call.1} parent=1 // pred_check_branch
      %14 = sbr.rel (0) target = $region5
    $region4: #{tpu_custom_call.1} parent=1 // pred_region
      %s16 = ssub.s32 2048, 2048
      %17 = vsyncadd [#allocation3], %s16
      %s18 = sshll.u32 [#allocation2], 4
      %s19 = int_to_ptr.vmem [resolvable:$true] %s18
      %24 = dma.hbm_to_vmem [thread:$0]  %s0, 2048, %s19, [#allocation3], 128, 128, 8
    $region5: #{tpu_custom_call.1} parent=1 // pred_fallthru
      _
    // Predicated region
    $region6: #{tpu_custom_call.1} parent=1 // pred_check
      _
    $region7: #{tpu_custom_call.1} parent=1 // pred_check_branch
      %26 = sbr.rel (0) target = $region9
    $region8: #{tpu_custom_call.1} parent=1 // pred_region
      %s28 = ssub.s32 2048, 2048
      %29 = vsyncadd [#allocation6], %s28
      %s30 = sshll.u32 [#allocation5], 4
      %s31 = int_to_ptr.vmem [resolvable:$true] %s30
      %36 = dma.hbm_to_vmem [thread:$0]  %s1, 2048, %s31, [#allocation6], 128, 128, 8
    $region9: #{tpu_custom_call.1} parent=1 // pred_fallthru
      _
    // Predicated region
    $region10: #{tpu_custom_call.1} parent=1 // pred_check
      _
    $region11: #{tpu_custom_call.1} parent=1 // pred_check_branch
      %38 = sbr.rel (0) target = $region13
    $region12: #{tpu_custom_call.1} parent=1 // pred_region
      %s40 = ssub.s32 4096, 4096
      %41 = vsyncadd [#allocation6], %s40
      %s42 = sshll.u32 [#allocation7], 4
      %s43 = int_to_ptr.vmem [resolvable:$true] %s42
      %48 = dma.hbm_to_vmem [thread:$0]  %s2, 4096, %s43, [#allocation6], 256, 256, 16
    $region13: #{tpu_custom_call.1} parent=1 // pred_fallthru
      _
    // Predicated region
    $region14: #{tpu_custom_call.1} parent=1 // pred_check
      _
    $region15: #{tpu_custom_call.1} parent=1 // pred_check_branch
      %50 = sbr.rel (0) target = $region17
    $region16: #{tpu_custom_call.1} parent=1 // pred_region
      _
    $region17: #{tpu_custom_call.1} parent=1 // pred_fallthru
      _
    // Predicated region
    $region18: #{tpu_custom_call.1} parent=1 // pred_check
      _
    $region19: #{tpu_custom_call.1} parent=1 // pred_check_branch
      %52 = sbr.rel (0) target = $region21
    $region20: #{tpu_custom_call.1} parent=1 // pred_region
      _
    $region21: #{tpu_custom_call.1} parent=1 // pred_fallthru
      _
    // Predicated region
    $region22: #{tpu_custom_call.1} parent=1 // pred_check
      _
    $region23: #{tpu_custom_call.1} parent=1 // pred_check_branch
      %54 = sbr.rel (0) target = $region25
    $region24: #{tpu_custom_call.1} parent=1 // pred_region
      %55 = dma.done [#allocation3], 2048
    $region25: #{tpu_custom_call.1} parent=1 // pred_fallthru
      _
    // Predicated region
    $region26: #{tpu_custom_call.1} parent=1 // pred_check
      _
    $region27: #{tpu_custom_call.1} parent=1 // pred_check_branch
      %57 = sbr.rel (0) target = $region29
    $region28: #{tpu_custom_call.1} parent=1 // pred_region
      %58 = dma.done [#allocation6], 2048
    $region29: #{tpu_custom_call.1} parent=1 // pred_fallthru
      _
    // Predicated region
    $region30: #{tpu_custom_call.1} parent=1 // pred_check
      _
    $region31: #{tpu_custom_call.1} parent=1 // pred_check_branch
      %60 = sbr.rel (0) target = $region33
    $region32: #{tpu_custom_call.1} parent=1 // pred_region
      %61 = dma.done [#allocation6], 4096
    $region33: #{tpu_custom_call.1} parent=1 // pred_fallthru
      _
    %v62 = vld [vmem:[#allocation2] sm:$0xff]
    %v63 = vld [vmem:[#allocation2 + $0x8] sm:$0xff]
    %v64 = vld [vmem:[#allocation2 + $0x10] sm:$0xff]
    %v65 = vld [vmem:[#allocation2 + $0x18] sm:$0xff]
    %v66 = vld [vmem:[#allocation2 + $0x20] sm:$0xff]
    %v67 = vld [vmem:[#allocation2 + $0x28] sm:$0xff]
    %v68 = vld [vmem:[#allocation2 + $0x30] sm:$0xff]
    %v69 = vld [vmem:[#allocation2 + $0x38] sm:$0xff]
    %v70 = vld [vmem:[#allocation2 + $0x40] sm:$0xff]
    %v71 = vld [vmem:[#allocation2 + $0x48] sm:$0xff]
    %v72 = vld [vmem:[#allocation2 + $0x50] sm:$0xff]
    %v73 = vld [vmem:[#allocation2 + $0x58] sm:$0xff]
    %v74 = vld [vmem:[#allocation2 + $0x60] sm:$0xff]
    %v75 = vld [vmem:[#allocation2 + $0x68] sm:$0xff]
    %v76 = vld [vmem:[#allocation2 + $0x70] sm:$0xff]
    %v77 = vld [vmem:[#allocation2 + $0x78] sm:$0xff]
    %v78 = vld [vmem:[#allocation5] sm:$0xff]
    %v79 = vld [vmem:[#allocation5 + $0x8] sm:$0xff]
    %v80 = vld [vmem:[#allocation5 + $0x10] sm:$0xff]
    %v81 = vld [vmem:[#allocation5 + $0x18] sm:$0xff]
    %v82 = vld [vmem:[#allocation5 + $0x20] sm:$0xff]
    %v83 = vld [vmem:[#allocation5 + $0x28] sm:$0xff]
    %v84 = vld [vmem:[#allocation5 + $0x30] sm:$0xff]
    %v85 = vld [vmem:[#allocation5 + $0x38] sm:$0xff]
    %v86 = vld [vmem:[#allocation5 + $0x40] sm:$0xff]
    %v87 = vld [vmem:[#allocation5 + $0x48] sm:$0xff]
    %v88 = vld [vmem:[#allocation5 + $0x50] sm:$0xff]
    %v89 = vld [vmem:[#allocation5 + $0x58] sm:$0xff]
    %v90 = vld [vmem:[#allocation5 + $0x60] sm:$0xff]
    %v91 = vld [vmem:[#allocation5 + $0x68] sm:$0xff]
    %v92 = vld [vmem:[#allocation5 + $0x70] sm:$0xff]
    %v93 = vld [vmem:[#allocation5 + $0x78] sm:$0xff]
    %v94 = vld [vmem:[#allocation7] sm:$0xff]
    %v95 = vld [vmem:[#allocation7 + $0x8] sm:$0xff]
    %v96 = vld [vmem:[#allocation7 + $0x10] sm:$0xff]
    %v97 = vld [vmem:[#allocation7 + $0x18] sm:$0xff]
    %v98 = vld [vmem:[#allocation7 + $0x20] sm:$0xff]
    %v99 = vld [vmem:[#allocation7 + $0x28] sm:$0xff]
    %v100 = vld [vmem:[#allocation7 + $0x30] sm:$0xff]
    %v101 = vld [vmem:[#allocation7 + $0x38] sm:$0xff]
    %v102 = vld [vmem:[#allocation7 + $0x40] sm:$0xff]
    %v103 = vld [vmem:[#allocation7 + $0x48] sm:$0xff]
    %v104 = vld [vmem:[#allocation7 + $0x50] sm:$0xff]
    %v105 = vld [vmem:[#allocation7 + $0x58] sm:$0xff]
    %v106 = vld [vmem:[#allocation7 + $0x60] sm:$0xff]
    %v107 = vld [vmem:[#allocation7 + $0x68] sm:$0xff]
    %v108 = vld [vmem:[#allocation7 + $0x70] sm:$0xff]
    %v109 = vld [vmem:[#allocation7 + $0x78] sm:$0xff]
    %v110 = vld [vmem:[#allocation7 + $0x80] sm:$0xff]
    %v111 = vld [vmem:[#allocation7 + $0x88] sm:$0xff]
    %v112 = vld [vmem:[#allocation7 + $0x90] sm:$0xff]
    %v113 = vld [vmem:[#allocation7 + $0x98] sm:$0xff]
    %v114 = vld [vmem:[#allocation7 + $0xa0] sm:$0xff]
    %v115 = vld [vmem:[#allocation7 + $0xa8] sm:$0xff]
    %v116 = vld [vmem:[#allocation7 + $0xb0] sm:$0xff]
    %v117 = vld [vmem:[#allocation7 + $0xb8] sm:$0xff]
    %v118 = vld [vmem:[#allocation7 + $0xc0] sm:$0xff]
    %v119 = vld [vmem:[#allocation7 + $0xc8] sm:$0xff]
    %v120 = vld [vmem:[#allocation7 + $0xd0] sm:$0xff]
    %v121 = vld [vmem:[#allocation7 + $0xd8] sm:$0xff]
    %v122 = vld [vmem:[#allocation7 + $0xe0] sm:$0xff]
    %v123 = vld [vmem:[#allocation7 + $0xe8] sm:$0xff]
    %v124 = vld [vmem:[#allocation7 + $0xf0] sm:$0xff]
    %v125 = vld [vmem:[#allocation7 + $0xf8] sm:$0xff]
    %126 = vmatprep.subr.mxu0 %v95
    %127 = vmatpush1.msra.mxu0 %v94
    %128 = vmatprep.subr.mxu0 %v97
    %129 = vmatpush1.msra.mxu0 %v96
    %130 = vmatprep.subr.mxu0 %v99
    %131 = vmatpush1.msra.mxu0 %v98
    %132 = vmatprep.subr.mxu0 %v101
    %133 = vmatpush1.msra.mxu0 %v100
    %134 = vmatprep.subr.mxu0 %v103
    %135 = vmatpush1.msra.mxu0 %v102
    %136 = vmatprep.subr.mxu0 %v105
    %137 = vmatpush1.msra.mxu0 %v104
    %138 = vmatprep.subr.mxu0 %v107
    %139 = vmatpush1.msra.mxu0 %v106
    %140 = vmatprep.subr.mxu0 %v109
    %141 = vmatpush1.msra.mxu0 %v108
    %142 = vmatprep.subr.mxu0 %v111
    %143 = vmatpush1.msra.mxu0 %v110
    %144 = vmatprep.subr.mxu0 %v113
    %145 = vmatpush1.msra.mxu0 %v112
    %146 = vmatprep.subr.mxu0 %v115
    %147 = vmatpush1.msra.mxu0 %v114
    %148 = vmatprep.subr.mxu0 %v117
    %149 = vmatpush1.msra.mxu0 %v116
    %150 = vmatprep.subr.mxu0 %v119
    %151 = vmatpush1.msra.mxu0 %v118
    %152 = vmatprep.subr.mxu0 %v121
    %153 = vmatpush1.msra.mxu0 %v120
    %154 = vmatprep.subr.mxu0 %v123
    %155 = vmatpush1.msra.mxu0 %v122
    %156 = vmatprep.subr.mxu0 %v125
    %157 = vmatpush1.msra.mxu0 %v124
    %158 = vmatprep.subr.mxu0 0.0
    %159 = vmatpush1.msra.mxu0 0.0
    %160 = vmatprep.subr.mxu0 0.0
    %161 = vmatpush1.msra.mxu0 0.0
    %162 = vmatprep.subr.mxu0 0.0
    %163 = vmatpush1.msra.mxu0 0.0
    %164 = vmatprep.subr.mxu0 0.0
    %165 = vmatpush1.msra.mxu0 0.0
    %166 = vmatprep.subr.mxu0 0.0
    %167 = vmatpush1.msra.mxu0 0.0
    %168 = vmatprep.subr.mxu0 0.0
    %169 = vmatpush1.msra.mxu0 0.0
    %170 = vmatprep.subr.mxu0 0.0
    %171 = vmatpush1.msra.mxu0 0.0
    %172 = vmatprep.subr.mxu0 0.0
    %173 = vmatpush1.msra.mxu0 0.0
    %174 = vmatprep.subr.mxu0 0.0
    %175 = vmatpush1.msra.mxu0 0.0
    %176 = vmatprep.subr.mxu0 0.0
    %177 = vmatpush1.msra.mxu0 0.0
    %178 = vmatprep.subr.mxu0 0.0
    %179 = vmatpush1.msra.mxu0 0.0
    %180 = vmatprep.subr.mxu0 0.0
    %181 = vmatpush1.msra.mxu0 0.0
    %182 = vmatprep.subr.mxu0 0.0
    %183 = vmatpush1.msra.mxu0 0.0
    %184 = vmatprep.subr.mxu0 0.0
    %185 = vmatpush1.msra.mxu0 0.0
    %186 = vmatprep.subr.mxu0 0.0
    %187 = vmatpush1.msra.mxu0 0.0
    %188 = vmatprep.subr.mxu0 0.0
    %189 = vmatpush1.msra.mxu0 0.0
    %190 = vmatprep.mubr.f32.mxu0 0.0
    %191 = vmatmul.mubr.f32.gmra.mrb[0].mxu0 %v78
    %v192 = vpop.f32.mrb[0].mxu0
    %v193 = vadd.f32 0.0, %v192
    %v194 = vpop.f32.mrb[0].mxu0
    %v195 = vadd.f32 0.0, %v194
    %196 = vmatprep.mubr.f32.mxu0 0.0
    %197 = vmatmul.mubr.f32.gmra.mrb[0].mxu0 %v79
    %v198 = vpop.f32.mrb[0].mxu0
    %v199 = vadd.f32 0.0, %v198
    %v200 = vpop.f32.mrb[0].mxu0
    %v201 = vadd.f32 0.0, %v200
    %202 = vmatprep.mubr.f32.mxu0 0.0
    %203 = vmatmul.mubr.f32.gmra.mrb[0].mxu0 %v80
    %v204 = vpop.f32.mrb[0].mxu0
    %v205 = vadd.f32 0.0, %v204
    %v206 = vpop.f32.mrb[0].mxu0
    %v207 = vadd.f32 0.0, %v206
    %208 = vmatprep.mubr.f32.mxu0 0.0
    %209 = vmatmul.mubr.f32.gmra.mrb[0].mxu0 %v81
    %v210 = vpop.f32.mrb[0].mxu0
    %v211 = vadd.f32 0.0, %v210
    %v212 = vpop.f32.mrb[0].mxu0
    %v213 = vadd.f32 0.0, %v212
    %214 = vmatprep.mubr.f32.mxu0 0.0
    %215 = vmatmul.mubr.f32.gmra.mrb[0].mxu0 %v82
    %v216 = vpop.f32.mrb[0].mxu0
    %v217 = vadd.f32 0.0, %v216
    %v218 = vpop.f32.mrb[0].mxu0
    %v219 = vadd.f32 0.0, %v218
    %220 = vmatprep.mubr.f32.mxu0 0.0
    %221 = vmatmul.mubr.f32.gmra.mrb[0].mxu0 %v83
    %v222 = vpop.f32.mrb[0].mxu0
    %v223 = vadd.f32 0.0, %v222
    %v224 = vpop.f32.mrb[0].mxu0
    %v225 = vadd.f32 0.0, %v224
    %226 = vmatprep.mubr.f32.mxu0 0.0
    %227 = vmatmul.mubr.f32.gmra.mrb[0].mxu0 %v84
    %v228 = vpop.f32.mrb[0].mxu0
    %v229 = vadd.f32 0.0, %v228
    %v230 = vpop.f32.mrb[0].mxu0
    %v231 = vadd.f32 0.0, %v230
    %232 = vmatprep.mubr.f32.mxu0 0.0
    %233 = vmatmul.mubr.f32.gmra.mrb[0].mxu0 %v85
    %v234 = vpop.f32.mrb[0].mxu0
    %v235 = vadd.f32 0.0, %v234
    %v236 = vpop.f32.mrb[0].mxu0
    %v237 = vadd.f32 0.0, %v236
    %238 = vmatprep.mubr.f32.mxu0 0.0
    %239 = vmatmul.mubr.f32.gmra.mrb[0].mxu0 %v86
    %v240 = vpop.f32.mrb[0].mxu0
    %v241 = vadd.f32 0.0, %v240
    %v242 = vpop.f32.mrb[0].mxu0
    %v243 = vadd.f32 0.0, %v242
    %244 = vmatprep.mubr.f32.mxu0 0.0
    %245 = vmatmul.mubr.f32.gmra.mrb[0].mxu0 %v87
    %v246 = vpop.f32.mrb[0].mxu0
    %v247 = vadd.f32 0.0, %v246
    %v248 = vpop.f32.mrb[0].mxu0
    %v249 = vadd.f32 0.0, %v248
    %250 = vmatprep.mubr.f32.mxu0 0.0
    %251 = vmatmul.mubr.f32.gmra.mrb[0].mxu0 %v88
    %v252 = vpop.f32.mrb[0].mxu0
    %v253 = vadd.f32 0.0, %v252
    %v254 = vpop.f32.mrb[0].mxu0
    %v255 = vadd.f32 0.0, %v254
    %256 = vmatprep.mubr.f32.mxu0 0.0
    %257 = vmatmul.mubr.f32.gmra.mrb[0].mxu0 %v89
    %v258 = vpop.f32.mrb[0].mxu0
    %v259 = vadd.f32 0.0, %v258
    %v260 = vpop.f32.mrb[0].mxu0
    %v261 = vadd.f32 0.0, %v260
    %262 = vmatprep.mubr.f32.mxu0 0.0
    %263 = vmatmul.mubr.f32.gmra.mrb[0].mxu0 %v90
    %v264 = vpop.f32.mrb[0].mxu0
    %v265 = vadd.f32 0.0, %v264
    %v266 = vpop.f32.mrb[0].mxu0
    %v267 = vadd.f32 0.0, %v266
    %268 = vmatprep.mubr.f32.mxu0 0.0
    %269 = vmatmul.mubr.f32.gmra.mrb[0].mxu0 %v91
    %v270 = vpop.f32.mrb[0].mxu0
    %v271 = vadd.f32 0.0, %v270
    %v272 = vpop.f32.mrb[0].mxu0
    %v273 = vadd.f32 0.0, %v272
    %274 = vmatprep.mubr.f32.mxu0 0.0
    %275 = vmatmul.mubr.f32.gmra.mrb[0].mxu0 %v92
    %v276 = vpop.f32.mrb[0].mxu0
    %v277 = vadd.f32 0.0, %v276
    %v278 = vpop.f32.mrb[0].mxu0
    %v279 = vadd.f32 0.0, %v278
    %280 = vmatprep.mubr.f32.mxu0 0.0
    %281 = vmatmul.mubr.f32.gmra.mrb[0].mxu0 %v93
    %v282 = vpop.f32.mrb[0].mxu0
    %v283 = vadd.f32 0.0, %v282
    %v284 = vpop.f32.mrb[0].mxu0
    %v285 = vadd.f32 0.0, %v284
    %286 = vdwg.mxu0
    %v287 = vmul.f32 %v193, 0.1
    %v288 = vmul.f32 %v199, 0.1
    %v289 = vmul.f32 %v205, 0.1
    %v290 = vmul.f32 %v211, 0.1
    %v291 = vmul.f32 %v217, 0.1
    %v292 = vmul.f32 %v223, 0.1
    %v293 = vmul.f32 %v229, 0.1
    %v294 = vmul.f32 %v235, 0.1
    %v295 = vmul.f32 %v241, 0.1
    %v296 = vmul.f32 %v247, 0.1
    %v297 = vmul.f32 %v253, 0.1
    %v298 = vmul.f32 %v259, 0.1
    %v299 = vmul.f32 %v265, 0.1
    %v300 = vmul.f32 %v271, 0.1
    %v301 = vmul.f32 %v277, 0.1
    %v302 = vmul.f32 %v283, 0.1
    %303 = vmatprep.subr.mxu0 0.0
    %304 = vmatpush1.msra.mxu0 %v193
    %305 = vmatprep.subr.mxu0 0.0
    %306 = vmatpush1.msra.mxu0 %v199
    %307 = vmatprep.subr.mxu0 0.0
    %308 = vmatpush1.msra.mxu0 %v205
    %309 = vmatprep.subr.mxu0 0.0
    %310 = vmatpush1.msra.mxu0 %v211
    %311 = vmatprep.subr.mxu0 0.0
    %312 = vmatpush1.msra.mxu0 %v217
    %313 = vmatprep.subr.mxu0 0.0
    %314 = vmatpush1.msra.mxu0 %v223
    %315 = vmatprep.subr.mxu0 0.0
    %316 = vmatpush1.msra.mxu0 %v229
    %317 = vmatprep.subr.mxu0 0.0
    %318 = vmatpush1.msra.mxu0 %v235
    %319 = vmatprep.subr.mxu0 0.0
    %320 = vmatpush1.msra.mxu0 %v241
    %321 = vmatprep.subr.mxu0 0.0
    %322 = vmatpush1.msra.mxu0 %v247
    %323 = vmatprep.subr.mxu0 0.0
    %324 = vmatpush1.msra.mxu0 %v253
    %325 = vmatprep.subr.mxu0 0.0
    %326 = vmatpush1.msra.mxu0 %v259
    %327 = vmatprep.subr.mxu0 0.0
    %328 = vmatpush1.msra.mxu0 %v265
    %329 = vmatprep.subr.mxu0 0.0
    %330 = vmatpush1.msra.mxu0 %v271
    %331 = vmatprep.subr.mxu0 0.0
    %332 = vmatpush1.msra.mxu0 %v277
    %333 = vmatprep.subr.mxu0 0.0
    %334 = vmatpush1.msra.mxu0 %v283
    %335 = vmatprep.subr.mxu0 0.0
    %336 = vmatpush1.msra.mxu0 0.0
    %337 = vmatprep.subr.mxu0 0.0
    %338 = vmatpush1.msra.mxu0 0.0
    %339 = vmatprep.subr.mxu0 0.0
    %340 = vmatpush1.msra.mxu0 0.0
    %341 = vmatprep.subr.mxu0 0.0
    %342 = vmatpush1.msra.mxu0 0.0
    %343 = vmatprep.subr.mxu0 0.0
    %344 = vmatpush1.msra.mxu0 0.0
    %345 = vmatprep.subr.mxu0 0.0
    %346 = vmatpush1.msra.mxu0 0.0
    %347 = vmatprep.subr.mxu0 0.0
    %348 = vmatpush1.msra.mxu0 0.0
    %349 = vmatprep.subr.mxu0 0.0
    %350 = vmatpush1.msra.mxu0 0.0
    %351 = vmatprep.subr.mxu0 0.0
    %352 = vmatpush1.msra.mxu0 0.0
    %353 = vmatprep.subr.mxu0 0.0
    %354 = vmatpush1.msra.mxu0 0.0
    %355 = vmatprep.subr.mxu0 0.0
    %356 = vmatpush1.msra.mxu0 0.0
    %357 = vmatprep.subr.mxu0 0.0
    %358 = vmatpush1.msra.mxu0 0.0
    %359 = vmatprep.subr.mxu0 0.0
    %360 = vmatpush1.msra.mxu0 0.0
    %361 = vmatprep.subr.mxu0 0.0
    %362 = vmatpush1.msra.mxu0 0.0
    %363 = vmatprep.subr.mxu0 0.0
    %364 = vmatpush1.msra.mxu0 0.0
    %365 = vmatprep.subr.mxu0 0.0
    %366 = vmatpush1.msra.mxu0 0.0
    %367 = vmatprep.mubr.f32.mxu0 0.0
    %368 = vmatmul.mubr.f32.gmra.mrb[0].mxu0 %v62
    %v369 = vpop.f32.mrb[0].mxu0
    %v370 = vadd.f32 %v287, %v369
    %v371 = vpop.f32.mrb[0].mxu0
    %372 = vmatprep.mubr.f32.mxu0 0.0
    %373 = vmatmul.mubr.f32.gmra.mrb[0].mxu0 %v63
    %v374 = vpop.f32.mrb[0].mxu0
    %v375 = vadd.f32 %v288, %v374
    %v376 = vpop.f32.mrb[0].mxu0
    %377 = vmatprep.mubr.f32.mxu0 0.0
    %378 = vmatmul.mubr.f32.gmra.mrb[0].mxu0 %v64
    %v379 = vpop.f32.mrb[0].mxu0
    %v380 = vadd.f32 %v289, %v379
    %v381 = vpop.f32.mrb[0].mxu0
    %382 = vmatprep.mubr.f32.mxu0 0.0
    %383 = vmatmul.mubr.f32.gmra.mrb[0].mxu0 %v65
    %v384 = vpop.f32.mrb[0].mxu0
    %v385 = vadd.f32 %v290, %v384
    %v386 = vpop.f32.mrb[0].mxu0
    %387 = vmatprep.mubr.f32.mxu0 0.0
    %388 = vmatmul.mubr.f32.gmra.mrb[0].mxu0 %v66
    %v389 = vpop.f32.mrb[0].mxu0
    %v390 = vadd.f32 %v291, %v389
    %v391 = vpop.f32.mrb[0].mxu0
    %392 = vmatprep.mubr.f32.mxu0 0.0
    %393 = vmatmul.mubr.f32.gmra.mrb[0].mxu0 %v67
    %v394 = vpop.f32.mrb[0].mxu0
    %v395 = vadd.f32 %v292, %v394
    %v396 = vpop.f32.mrb[0].mxu0
    %397 = vmatprep.mubr.f32.mxu0 0.0
    %398 = vmatmul.mubr.f32.gmra.mrb[0].mxu0 %v68
    %v399 = vpop.f32.mrb[0].mxu0
    %v400 = vadd.f32 %v293, %v399
    %v401 = vpop.f32.mrb[0].mxu0
    %402 = vmatprep.mubr.f32.mxu0 0.0
    %403 = vmatmul.mubr.f32.gmra.mrb[0].mxu0 %v69
    %v404 = vpop.f32.mrb[0].mxu0
    %v405 = vadd.f32 %v294, %v404
    %v406 = vpop.f32.mrb[0].mxu0
    %407 = vmatprep.mubr.f32.mxu0 0.0
    %408 = vmatmul.mubr.f32.gmra.mrb[0].mxu0 %v70
    %v409 = vpop.f32.mrb[0].mxu0
    %v410 = vadd.f32 %v295, %v409
    %v411 = vpop.f32.mrb[0].mxu0
    %412 = vmatprep.mubr.f32.mxu0 0.0
    %413 = vmatmul.mubr.f32.gmra.mrb[0].mxu0 %v71
    %v414 = vpop.f32.mrb[0].mxu0
    %v415 = vadd.f32 %v296, %v414
    %v416 = vpop.f32.mrb[0].mxu0
    %417 = vmatprep.mubr.f32.mxu0 0.0
    %418 = vmatmul.mubr.f32.gmra.mrb[0].mxu0 %v72
    %v419 = vpop.f32.mrb[0].mxu0
    %v420 = vadd.f32 %v297, %v419
    %v421 = vpop.f32.mrb[0].mxu0
    %422 = vmatprep.mubr.f32.mxu0 0.0
    %423 = vmatmul.mubr.f32.gmra.mrb[0].mxu0 %v73
    %v424 = vpop.f32.mrb[0].mxu0
    %v425 = vadd.f32 %v298, %v424
    %v426 = vpop.f32.mrb[0].mxu0
    %427 = vmatprep.mubr.f32.mxu0 0.0
    %428 = vmatmul.mubr.f32.gmra.mrb[0].mxu0 %v74
    %v429 = vpop.f32.mrb[0].mxu0
    %v430 = vadd.f32 %v299, %v429
    %v431 = vpop.f32.mrb[0].mxu0
    %432 = vmatprep.mubr.f32.mxu0 0.0
    %433 = vmatmul.mubr.f32.gmra.mrb[0].mxu0 %v75
    %v434 = vpop.f32.mrb[0].mxu0
    %v435 = vadd.f32 %v300, %v434
    %v436 = vpop.f32.mrb[0].mxu0
    %437 = vmatprep.mubr.f32.mxu0 0.0
    %438 = vmatmul.mubr.f32.gmra.mrb[0].mxu0 %v76
    %v439 = vpop.f32.mrb[0].mxu0
    %v440 = vadd.f32 %v301, %v439
    %v441 = vpop.f32.mrb[0].mxu0
    %442 = vmatprep.mubr.f32.mxu0 0.0
    %443 = vmatmul.mubr.f32.gmra.mrb[0].mxu0 %v77
    %v444 = vpop.f32.mrb[0].mxu0
    %v445 = vadd.f32 %v302, %v444
    %v446 = vpop.f32.mrb[0].mxu0
    %447 = vdwg.mxu0
    %v448 = vld [vmem:[%s3] sm:$0x1]
    %v450 = vlaneseq
    %v451 = vshrl.u32 %v450, 7
    %v452 = vsub.s32 0, %v451
    %v453 = vrot.slane %v448, %v452
    %v455 = vadd.f32 %v370, %v453
    %v456 = vadd.f32 %v375, %v453
    %v457 = vadd.f32 %v380, %v453
    %v458 = vadd.f32 %v385, %v453
    %v459 = vadd.f32 %v390, %v453
    %v460 = vadd.f32 %v395, %v453
    %v461 = vadd.f32 %v400, %v453
    %v462 = vadd.f32 %v405, %v453
    %v463 = vadd.f32 %v410, %v453
    %v464 = vadd.f32 %v415, %v453
    %v465 = vadd.f32 %v420, %v453
    %v466 = vadd.f32 %v425, %v453
    %v467 = vadd.f32 %v430, %v453
    %v468 = vadd.f32 %v435, %v453
    %v469 = vadd.f32 %v440, %v453
    %v470 = vadd.f32 %v445, %v453
    %v471 = vmax.f32 %v455, 0.0
    %v472 = vmax.f32 %v456, 0.0
    %v473 = vmax.f32 %v457, 0.0
    %v474 = vmax.f32 %v458, 0.0
    %v475 = vmax.f32 %v459, 0.0
    %v476 = vmax.f32 %v460, 0.0
    %v477 = vmax.f32 %v461, 0.0
    %v478 = vmax.f32 %v462, 0.0
    %v479 = vmax.f32 %v463, 0.0
    %v480 = vmax.f32 %v464, 0.0
    %v481 = vmax.f32 %v465, 0.0
    %v482 = vmax.f32 %v466, 0.0
    %v483 = vmax.f32 %v467, 0.0
    %v484 = vmax.f32 %v468, 0.0
    %v485 = vmax.f32 %v469, 0.0
    %v486 = vmax.f32 %v470, 0.0
    %487 = vmatprep.subr.mxu0 0.0
    %488 = vmatpush1.msra.mxu0 %v95
    %489 = vmatprep.subr.mxu0 0.0
    %490 = vmatpush1.msra.mxu0 %v97
    %491 = vmatprep.subr.mxu0 0.0
    %492 = vmatpush1.msra.mxu0 %v99
    %493 = vmatprep.subr.mxu0 0.0
    %494 = vmatpush1.msra.mxu0 %v101
    %495 = vmatprep.subr.mxu0 0.0
    %496 = vmatpush1.msra.mxu0 %v103
    %497 = vmatprep.subr.mxu0 0.0
    %498 = vmatpush1.msra.mxu0 %v105
    %499 = vmatprep.subr.mxu0 0.0
    %500 = vmatpush1.msra.mxu0 %v107
    %501 = vmatprep.subr.mxu0 0.0
    %502 = vmatpush1.msra.mxu0 %v109
    %503 = vmatprep.subr.mxu0 0.0
    %504 = vmatpush1.msra.mxu0 %v111
    %505 = vmatprep.subr.mxu0 0.0
    %506 = vmatpush1.msra.mxu0 %v113
    %507 = vmatprep.subr.mxu0 0.0
    %508 = vmatpush1.msra.mxu0 %v115
    %509 = vmatprep.subr.mxu0 0.0
    %510 = vmatpush1.msra.mxu0 %v117
    %511 = vmatprep.subr.mxu0 0.0
    %512 = vmatpush1.msra.mxu0 %v119
    %513 = vmatprep.subr.mxu0 0.0
    %514 = vmatpush1.msra.mxu0 %v121
    %515 = vmatprep.subr.mxu0 0.0
    %516 = vmatpush1.msra.mxu0 %v123
    %517 = vmatprep.subr.mxu0 0.0
    %518 = vmatpush1.msra.mxu0 %v125
    %519 = vmatprep.subr.mxu0 0.0
    %520 = vmatpush1.msra.mxu0 0.0
    %521 = vmatprep.subr.mxu0 0.0
    %522 = vmatpush1.msra.mxu0 0.0
    %523 = vmatprep.subr.mxu0 0.0
    %524 = vmatpush1.msra.mxu0 0.0
    %525 = vmatprep.subr.mxu0 0.0
    %526 = vmatpush1.msra.mxu0 0.0
    %527 = vmatprep.subr.mxu0 0.0
    %528 = vmatpush1.msra.mxu0 0.0
    %529 = vmatprep.subr.mxu0 0.0
    %530 = vmatpush1.msra.mxu0 0.0
    %531 = vmatprep.subr.mxu0 0.0
    %532 = vmatpush1.msra.mxu0 0.0
    %533 = vmatprep.subr.mxu0 0.0
    %534 = vmatpush1.msra.mxu0 0.0
    %535 = vmatprep.subr.mxu0 0.0
    %536 = vmatpush1.msra.mxu0 0.0
    %537 = vmatprep.subr.mxu0 0.0
    %538 = vmatpush1.msra.mxu0 0.0
    %539 = vmatprep.subr.mxu0 0.0
    %540 = vmatpush1.msra.mxu0 0.0
    %541 = vmatprep.subr.mxu0 0.0
    %542 = vmatpush1.msra.mxu0 0.0
    %543 = vmatprep.subr.mxu0 0.0
    %544 = vmatpush1.msra.mxu0 0.0
    %545 = vmatprep.subr.mxu0 0.0
    %546 = vmatpush1.msra.mxu0 0.0
    %547 = vmatprep.subr.mxu0 0.0
    %548 = vmatpush1.msra.mxu0 0.0
    %549 = vmatprep.subr.mxu0 0.0
    %550 = vmatpush1.msra.mxu0 0.0
    %551 = vmatprep.mubr.f32.mxu0 0.0
    %552 = vmatmul.mubr.f32.gmra.mrb[0].mxu0 %v471
    %v553 = vpop.f32.mrb[0].mxu0
    %v554 = vadd.f32 0.0, %v553
    %v555 = vpop.f32.mrb[0].mxu0
    %556 = vmatprep.mubr.f32.mxu0 0.0
    %557 = vmatmul.mubr.f32.gmra.mrb[0].mxu0 %v472
    %v558 = vpop.f32.mrb[0].mxu0
    %v559 = vadd.f32 0.0, %v558
    %v560 = vpop.f32.mrb[0].mxu0
    %561 = vmatprep.mubr.f32.mxu0 0.0
    %562 = vmatmul.mubr.f32.gmra.mrb[0].mxu0 %v473
    %v563 = vpop.f32.mrb[0].mxu0
    %v564 = vadd.f32 0.0, %v563
    %v565 = vpop.f32.mrb[0].mxu0
    %566 = vmatprep.mubr.f32.mxu0 0.0
    %567 = vmatmul.mubr.f32.gmra.mrb[0].mxu0 %v474
    %v568 = vpop.f32.mrb[0].mxu0
    %v569 = vadd.f32 0.0, %v568
    %v570 = vpop.f32.mrb[0].mxu0
    %571 = vmatprep.mubr.f32.mxu0 0.0
    %572 = vmatmul.mubr.f32.gmra.mrb[0].mxu0 %v475
    %v573 = vpop.f32.mrb[0].mxu0
    %v574 = vadd.f32 0.0, %v573
    %v575 = vpop.f32.mrb[0].mxu0
    %576 = vmatprep.mubr.f32.mxu0 0.0
    %577 = vmatmul.mubr.f32.gmra.mrb[0].mxu0 %v476
    %v578 = vpop.f32.mrb[0].mxu0
    %v579 = vadd.f32 0.0, %v578
    %v580 = vpop.f32.mrb[0].mxu0
    %581 = vmatprep.mubr.f32.mxu0 0.0
    %582 = vmatmul.mubr.f32.gmra.mrb[0].mxu0 %v477
    %v583 = vpop.f32.mrb[0].mxu0
    %v584 = vadd.f32 0.0, %v583
    %v585 = vpop.f32.mrb[0].mxu0
    %586 = vmatprep.mubr.f32.mxu0 0.0
    %587 = vmatmul.mubr.f32.gmra.mrb[0].mxu0 %v478
    %v588 = vpop.f32.mrb[0].mxu0
    %v589 = vadd.f32 0.0, %v588
    %v590 = vpop.f32.mrb[0].mxu0
    %591 = vmatprep.mubr.f32.mxu0 0.0
    %592 = vmatmul.mubr.f32.gmra.mrb[0].mxu0 %v479
    %v593 = vpop.f32.mrb[0].mxu0
    %v594 = vadd.f32 0.0, %v593
    %v595 = vpop.f32.mrb[0].mxu0
    %596 = vmatprep.mubr.f32.mxu0 0.0
    %597 = vmatmul.mubr.f32.gmra.mrb[0].mxu0 %v480
    %v598 = vpop.f32.mrb[0].mxu0
    %v599 = vadd.f32 0.0, %v598
    %v600 = vpop.f32.mrb[0].mxu0
    %601 = vmatprep.mubr.f32.mxu0 0.0
    %602 = vmatmul.mubr.f32.gmra.mrb[0].mxu0 %v481
    %v603 = vpop.f32.mrb[0].mxu0
    %v604 = vadd.f32 0.0, %v603
    %v605 = vpop.f32.mrb[0].mxu0
    %606 = vmatprep.mubr.f32.mxu0 0.0
    %607 = vmatmul.mubr.f32.gmra.mrb[0].mxu0 %v482
    %v608 = vpop.f32.mrb[0].mxu0
    %v609 = vadd.f32 0.0, %v608
    %v610 = vpop.f32.mrb[0].mxu0
    %611 = vmatprep.mubr.f32.mxu0 0.0
    %612 = vmatmul.mubr.f32.gmra.mrb[0].mxu0 %v483
    %v613 = vpop.f32.mrb[0].mxu0
    %v614 = vadd.f32 0.0, %v613
    %v615 = vpop.f32.mrb[0].mxu0
    %616 = vmatprep.mubr.f32.mxu0 0.0
    %617 = vmatmul.mubr.f32.gmra.mrb[0].mxu0 %v484
    %v618 = vpop.f32.mrb[0].mxu0
    %v619 = vadd.f32 0.0, %v618
    %v620 = vpop.f32.mrb[0].mxu0
    %621 = vmatprep.mubr.f32.mxu0 0.0
    %622 = vmatmul.mubr.f32.gmra.mrb[0].mxu0 %v485
    %v623 = vpop.f32.mrb[0].mxu0
    %v624 = vadd.f32 0.0, %v623
    %v625 = vpop.f32.mrb[0].mxu0
    %626 = vmatprep.mubr.f32.mxu0 0.0
    %627 = vmatmul.mubr.f32.gmra.mrb[0].mxu0 %v486
    %v628 = vpop.f32.mrb[0].mxu0
    %v629 = vadd.f32 0.0, %v628
    %v630 = vpop.f32.mrb[0].mxu0
    %631 = vdwg.mxu0
    %v632 = vmul.f32 %v195, 0.1
    %v633 = vmul.f32 %v201, 0.1
    %v634 = vmul.f32 %v207, 0.1
    %v635 = vmul.f32 %v213, 0.1
    %v636 = vmul.f32 %v219, 0.1
    %v637 = vmul.f32 %v225, 0.1
    %v638 = vmul.f32 %v231, 0.1
    %v639 = vmul.f32 %v237, 0.1
    %v640 = vmul.f32 %v243, 0.1
    %v641 = vmul.f32 %v249, 0.1
    %v642 = vmul.f32 %v255, 0.1
    %v643 = vmul.f32 %v261, 0.1
    %v644 = vmul.f32 %v267, 0.1
    %v645 = vmul.f32 %v273, 0.1
    %v646 = vmul.f32 %v279, 0.1
    %v647 = vmul.f32 %v285, 0.1
    %648 = vmatprep.subr.mxu0 0.0
    %649 = vmatpush1.msra.mxu0 %v554
    %650 = vmatprep.subr.mxu0 0.0
    %651 = vmatpush1.msra.mxu0 %v559
    %652 = vmatprep.subr.mxu0 0.0
    %653 = vmatpush1.msra.mxu0 %v564
    %654 = vmatprep.subr.mxu0 0.0
    %655 = vmatpush1.msra.mxu0 %v569
    %656 = vmatprep.subr.mxu0 0.0
    %657 = vmatpush1.msra.mxu0 %v574
    %658 = vmatprep.subr.mxu0 0.0
    %659 = vmatpush1.msra.mxu0 %v579
    %660 = vmatprep.subr.mxu0 0.0
    %661 = vmatpush1.msra.mxu0 %v584
    %662 = vmatprep.subr.mxu0 0.0
    %663 = vmatpush1.msra.mxu0 %v589
    %664 = vmatprep.subr.mxu0 0.0
    %665 = vmatpush1.msra.mxu0 %v594
    %666 = vmatprep.subr.mxu0 0.0
    %667 = vmatpush1.msra.mxu0 %v599
    %668 = vmatprep.subr.mxu0 0.0
    %669 = vmatpush1.msra.mxu0 %v604
    %670 = vmatprep.subr.mxu0 0.0
    %671 = vmatpush1.msra.mxu0 %v609
    %672 = vmatprep.subr.mxu0 0.0
    %673 = vmatpush1.msra.mxu0 %v614
    %674 = vmatprep.subr.mxu0 0.0
    %675 = vmatpush1.msra.mxu0 %v619
    %676 = vmatprep.subr.mxu0 0.0
    %677 = vmatpush1.msra.mxu0 %v624
    %678 = vmatprep.subr.mxu0 0.0
    %679 = vmatpush1.msra.mxu0 %v629
    %680 = vmatprep.subr.mxu0 0.0
    %681 = vmatpush1.msra.mxu0 0.0
    %682 = vmatprep.subr.mxu0 0.0
    %683 = vmatpush1.msra.mxu0 0.0
    %684 = vmatprep.subr.mxu0 0.0
    %685 = vmatpush1.msra.mxu0 0.0
    %686 = vmatprep.subr.mxu0 0.0
    %687 = vmatpush1.msra.mxu0 0.0
    %688 = vmatprep.subr.mxu0 0.0
    %689 = vmatpush1.msra.mxu0 0.0
    %690 = vmatprep.subr.mxu0 0.0
    %691 = vmatpush1.msra.mxu0 0.0
    %692 = vmatprep.subr.mxu0 0.0
    %693 = vmatpush1.msra.mxu0 0.0
    %694 = vmatprep.subr.mxu0 0.0
    %695 = vmatpush1.msra.mxu0 0.0
    %696 = vmatprep.subr.mxu0 0.0
    %697 = vmatpush1.msra.mxu0 0.0
    %698 = vmatprep.subr.mxu0 0.0
    %699 = vmatpush1.msra.mxu0 0.0
    %700 = vmatprep.subr.mxu0 0.0
    %701 = vmatpush1.msra.mxu0 0.0
    %702 = vmatprep.subr.mxu0 0.0
    %703 = vmatpush1.msra.mxu0 0.0
    %704 = vmatprep.subr.mxu0 0.0
    %705 = vmatpush1.msra.mxu0 0.0
    %706 = vmatprep.subr.mxu0 0.0
    %707 = vmatpush1.msra.mxu0 0.0
    %708 = vmatprep.subr.mxu0 0.0
    %709 = vmatpush1.msra.mxu0 0.0
    %710 = vmatprep.subr.mxu0 0.0
    %711 = vmatpush1.msra.mxu0 0.0
    %712 = vmatprep.mubr.f32.mxu0 0.0
    %713 = vmatmul.mubr.f32.gmra.mrb[0].mxu0 %v62
    %v714 = vpop.f32.mrb[0].mxu0
    %v715 = vadd.f32 %v632, %v714
    %v716 = vpop.f32.mrb[0].mxu0
    %717 = vmatprep.mubr.f32.mxu0 0.0
    %718 = vmatmul.mubr.f32.gmra.mrb[0].mxu0 %v63
    %v719 = vpop.f32.mrb[0].mxu0
    %v720 = vadd.f32 %v633, %v719
    %v721 = vpop.f32.mrb[0].mxu0
    %722 = vmatprep.mubr.f32.mxu0 0.0
    %723 = vmatmul.mubr.f32.gmra.mrb[0].mxu0 %v64
    %v724 = vpop.f32.mrb[0].mxu0
    %v725 = vadd.f32 %v634, %v724
    %v726 = vpop.f32.mrb[0].mxu0
    %727 = vmatprep.mubr.f32.mxu0 0.0
    %728 = vmatmul.mubr.f32.gmra.mrb[0].mxu0 %v65
    %v729 = vpop.f32.mrb[0].mxu0
    %v730 = vadd.f32 %v635, %v729
    %v731 = vpop.f32.mrb[0].mxu0
    %732 = vmatprep.mubr.f32.mxu0 0.0
    %733 = vmatmul.mubr.f32.gmra.mrb[0].mxu0 %v66
    %v734 = vpop.f32.mrb[0].mxu0
    %v735 = vadd.f32 %v636, %v734
    %v736 = vpop.f32.mrb[0].mxu0
    %737 = vmatprep.mubr.f32.mxu0 0.0
    %738 = vmatmul.mubr.f32.gmra.mrb[0].mxu0 %v67
    %v739 = vpop.f32.mrb[0].mxu0
    %v740 = vadd.f32 %v637, %v739
    %v741 = vpop.f32.mrb[0].mxu0
    %742 = vmatprep.mubr.f32.mxu0 0.0
    %743 = vmatmul.mubr.f32.gmra.mrb[0].mxu0 %v68
    %v744 = vpop.f32.mrb[0].mxu0
    %v745 = vadd.f32 %v638, %v744
    %v746 = vpop.f32.mrb[0].mxu0
    %747 = vmatprep.mubr.f32.mxu0 0.0
    %748 = vmatmul.mubr.f32.gmra.mrb[0].mxu0 %v69
    %v749 = vpop.f32.mrb[0].mxu0
    %v750 = vadd.f32 %v639, %v749
    %v751 = vpop.f32.mrb[0].mxu0
    %752 = vmatprep.mubr.f32.mxu0 0.0
    %753 = vmatmul.mubr.f32.gmra.mrb[0].mxu0 %v70
    %v754 = vpop.f32.mrb[0].mxu0
    %v755 = vadd.f32 %v640, %v754
    %v756 = vpop.f32.mrb[0].mxu0
    %757 = vmatprep.mubr.f32.mxu0 0.0
    %758 = vmatmul.mubr.f32.gmra.mrb[0].mxu0 %v71
    %v759 = vpop.f32.mrb[0].mxu0
    %v760 = vadd.f32 %v641, %v759
    %v761 = vpop.f32.mrb[0].mxu0
    %762 = vmatprep.mubr.f32.mxu0 0.0
    %763 = vmatmul.mubr.f32.gmra.mrb[0].mxu0 %v72
    %v764 = vpop.f32.mrb[0].mxu0
    %v765 = vadd.f32 %v642, %v764
    %v766 = vpop.f32.mrb[0].mxu0
    %767 = vmatprep.mubr.f32.mxu0 0.0
    %768 = vmatmul.mubr.f32.gmra.mrb[0].mxu0 %v73
    %v769 = vpop.f32.mrb[0].mxu0
    %v770 = vadd.f32 %v643, %v769
    %v771 = vpop.f32.mrb[0].mxu0
    %772 = vmatprep.mubr.f32.mxu0 0.0
    %773 = vmatmul.mubr.f32.gmra.mrb[0].mxu0 %v74
    %v774 = vpop.f32.mrb[0].mxu0
    %v775 = vadd.f32 %v644, %v774
    %v776 = vpop.f32.mrb[0].mxu0
    %777 = vmatprep.mubr.f32.mxu0 0.0
    %778 = vmatmul.mubr.f32.gmra.mrb[0].mxu0 %v75
    %v779 = vpop.f32.mrb[0].mxu0
    %v780 = vadd.f32 %v645, %v779
    %v781 = vpop.f32.mrb[0].mxu0
    %782 = vmatprep.mubr.f32.mxu0 0.0
    %783 = vmatmul.mubr.f32.gmra.mrb[0].mxu0 %v76
    %v784 = vpop.f32.mrb[0].mxu0
    %v785 = vadd.f32 %v646, %v784
    %v786 = vpop.f32.mrb[0].mxu0
    %787 = vmatprep.mubr.f32.mxu0 0.0
    %788 = vmatmul.mubr.f32.gmra.mrb[0].mxu0 %v77
    %v789 = vpop.f32.mrb[0].mxu0
    %v790 = vadd.f32 %v647, %v789
    %v791 = vpop.f32.mrb[0].mxu0
    %792 = vdwg.mxu0
    %v793 = vld [vmem:[%s4] sm:$0x1]
    %v795 = vlaneseq
    %v796 = vshrl.u32 %v795, 7
    %v797 = vsub.s32 0, %v796
    %v798 = vrot.slane %v793, %v797
    %v800 = vadd.f32 %v715, %v798
    %v801 = vadd.f32 %v720, %v798
    %v802 = vadd.f32 %v725, %v798
    %v803 = vadd.f32 %v730, %v798
    %v804 = vadd.f32 %v735, %v798
    %v805 = vadd.f32 %v740, %v798
    %v806 = vadd.f32 %v745, %v798
    %v807 = vadd.f32 %v750, %v798
    %v808 = vadd.f32 %v755, %v798
    %v809 = vadd.f32 %v760, %v798
    %v810 = vadd.f32 %v765, %v798
    %v811 = vadd.f32 %v770, %v798
    %v812 = vadd.f32 %v775, %v798
    %v813 = vadd.f32 %v780, %v798
    %v814 = vadd.f32 %v785, %v798
    %v815 = vadd.f32 %v790, %v798
    %816 = vst [vmem:[#allocation8] sm:$0xff] %v800
    %817 = vst [vmem:[#allocation8 + $0x8] sm:$0xff] %v801
    %818 = vst [vmem:[#allocation8 + $0x10] sm:$0xff] %v802
    %819 = vst [vmem:[#allocation8 + $0x18] sm:$0xff] %v803
    %820 = vst [vmem:[#allocation8 + $0x20] sm:$0xff] %v804
    %821 = vst [vmem:[#allocation8 + $0x28] sm:$0xff] %v805
    %822 = vst [vmem:[#allocation8 + $0x30] sm:$0xff] %v806
    %823 = vst [vmem:[#allocation8 + $0x38] sm:$0xff] %v807
    %824 = vst [vmem:[#allocation8 + $0x40] sm:$0xff] %v808
    %825 = vst [vmem:[#allocation8 + $0x48] sm:$0xff] %v809
    %826 = vst [vmem:[#allocation8 + $0x50] sm:$0xff] %v810
    %827 = vst [vmem:[#allocation8 + $0x58] sm:$0xff] %v811
    %828 = vst [vmem:[#allocation8 + $0x60] sm:$0xff] %v812
    %829 = vst [vmem:[#allocation8 + $0x68] sm:$0xff] %v813
    %830 = vst [vmem:[#allocation8 + $0x70] sm:$0xff] %v814
    %831 = vst [vmem:[#allocation8 + $0x78] sm:$0xff] %v815
    // Predicated region
    $region34: #{tpu_custom_call.1} parent=1 // pred_check
      _
    $region35: #{tpu_custom_call.1} parent=1 // pred_check_branch
      %833 = sbr.rel (0) target = $region37
    $region36: #{tpu_custom_call.1} parent=1 // pred_region
      %s835 = ssub.s32 2048, 2048
      %836 = vsyncadd [#allocation4], %s835
      %s837 = sshll.u32 [#allocation8], 4
      %s838 = int_to_ptr.vmem [resolvable:$true] %s837
      %843 = dma.vmem_to_hbm [thread:$0]  %s838, 2048, %s5, [#allocation4], 128, 128, 8
    $region37: #{tpu_custom_call.1} parent=1 // pred_fallthru
      _
    // Predicated region
    $region38: #{tpu_custom_call.1} parent=1 // pred_check
      _
    $region39: #{tpu_custom_call.1} parent=1 // pred_check_branch
      %845 = sbr.rel (0) target = $region41
    $region40: #{tpu_custom_call.1} parent=1 // pred_region
      %846 = dma.done [#allocation4], 2048
    $region41: #{tpu_custom_call.1} parent=1 // pred_fallthru
      _
    %847 = vsyncpa [#allocation3], 1
    %848 = vsyncpa [#allocation6], 1
    %849 = vsyncpa [#allocation4], 1

</llo_original>
